<compile_context>
chip_gen: v5e
topology: v5e:2x2
jax: 0.10.0
libtpu: 0.0.40
codegen_flags: <defaults>
</compile_context>

<pallas_src>
import functools

import jax
import jax.numpy as jnp
from jax.experimental import pallas as pl
from jax.experimental.pallas import tpu as pltpu


def _round_up(x, m):
    return (x + m - 1) // m * m


def _gather_tile_kernel(rows_ref, table_hbm, out_ref, stage_ref, sems, *, tile, ring):
    """Gather `tile` rows of `table_hbm` (row ids from rows_ref) into out_ref.

    rows_ref  : (n_tok_padded,) int32 in SMEM (scalar prefetch) -- merged row ids
    table_hbm : (prompt_len + vocab, D) merged table, left in HBM (pl.ANY)
    out_ref   : (tile, D) output block (VMEM, pipelined by BlockSpec)
    stage_ref : (tile, D) VMEM staging buffer (DMA destination)
    sems      : (ring,) DMA semaphores -- ring of in-flight row copies
    """
    base = pl.program_id(0) * tile

    def issue(t):
        row = rows_ref[base + t]
        pltpu.make_async_copy(
            table_hbm.at[pl.ds(row, 1), :],
            stage_ref.at[pl.ds(t, 1), :],
            sems.at[t % ring],
        ).start()

    # Prime the ring: first `ring` row DMAs in flight (ring <= tile).
    for t in range(ring):
        issue(t)

    @pl.loop(0, tile)
    def _(t):
        # Wait for row t (wait descriptor only needs the right transfer size).
        pltpu.make_async_copy(
            table_hbm.at[pl.ds(0, 1), :],
            stage_ref.at[pl.ds(t, 1), :],
            sems.at[t % ring],
        ).wait()

        @pl.when(t + ring < tile)
        def _():
            issue(t + ring)

    # One dense (tile, D) store; the output BlockSpec DMAs the block to HBM.
    out_ref[...] = stage_ref[...]


def prompt_embedding_forward(input_ids, prompt_table, normal_table, prompt_length,
                             *, tokens_per_tile=256, ring=8):
    """input_ids: (B, S) int; prompt_table: (P, D); normal_table: (V, D) -> (B, S, D)."""
    batch, seq = input_ids.shape
    p_rows, d = prompt_table.shape
    v_rows, d2 = normal_table.shape
    assert d == d2 and p_rows == prompt_length and seq >= prompt_length

    # Merged table [prompt rows; vocab rows].
    # NOTE: in a real model build this ONCE at init (pure relayout), not per call.
    merged = jnp.concatenate(
        [prompt_table.astype(normal_table.dtype), normal_table], axis=0)

    # Hoist the per-token table select out of the kernel: positions
    # < prompt_length keep their id (prompt rows sit at the front of `merged`);
    # all other positions are offset by prompt_length into the vocab rows.
    pos = jnp.arange(seq, dtype=jnp.int32)[None, :]
    ids = input_ids.astype(jnp.int32)
    rows = jnp.where(pos < prompt_length, ids, ids + prompt_length)
    rows = jnp.clip(rows, 0, p_rows + v_rows - 1)   # guard bad ids -> no OOB DMA
    flat_rows = rows.reshape(-1)

    n_tok = batch * seq
    tile = max(8, min(tokens_per_tile, _round_up(n_tok, 8)))   # sublane-dense tiles
    ring = max(1, min(ring, tile))
    n_pad = _round_up(n_tok, tile)
    if n_pad != n_tok:
        flat_rows = jnp.concatenate(
            [flat_rows, jnp.zeros((n_pad - n_tok,), jnp.int32)])

    kernel = functools.partial(_gather_tile_kernel, tile=tile, ring=ring)
    itemsize = jnp.dtype(merged.dtype).itemsize

    flat_out = pl.pallas_call(
        kernel,
        out_shape=jax.ShapeDtypeStruct((n_pad, d), merged.dtype),
        grid_spec=pltpu.PrefetchScalarGridSpec(
            num_scalar_prefetch=1,                        # flat_rows -> SMEM
            grid=(n_pad // tile,),                        # one tile of tokens per step
            in_specs=[pl.BlockSpec(memory_space=pl.ANY)], # merged table stays in HBM
            out_specs=pl.BlockSpec((tile, d), lambda i, rows: (i, 0)),
            scratch_shapes=[
                pltpu.VMEM((tile, d), merged.dtype),      # staging buffer
                pltpu.SemaphoreType.DMA((ring,)),         # DMA ring semaphores
            ],
        ),
        compiler_params=pltpu.CompilerParams(
            dimension_semantics=("parallel",),            # independent token tiles
        ),
        cost_estimate=pl.CostEstimate(
            flops=0,
            transcendentals=0,
            bytes_accessed=2 * n_pad * d * itemsize + n_pad * 4,
        ),
    )(flat_rows, merged)

    return flat_out[:n_tok].reshape(batch, seq, d)


if __name__ == "__main__":
    # Small shapes consistent with the module's forward.
    PROMPT_LENGTH = 4
    EMBED_DIM = 32
    VOCAB_SIZE = 64
    BATCH = 2
    SEQ = 8

    key = jax.random.PRNGKey(0)
    k_w, k_idx, k_prompt_ids, k_normal_ids = jax.random.split(key, 4)

    # normal_embedder.weight (deterministic init; synthetic, no checkpoint load)
    normal_weight = jax.random.normal(k_w, (VOCAB_SIZE, EMBED_DIM), dtype=jnp.float32)
    # prompt_embedder.weight = normal_embedder.weight[sampled_indices, :]
    sampled_indices = jax.random.randint(k_idx, (PROMPT_LENGTH,), 0, VOCAB_SIZE)
    prompt_weight = normal_weight[sampled_indices, :]

    # input: first PROMPT_LENGTH tokens are prompt-table indices (< PROMPT_LENGTH),
    # remaining tokens are normal vocab ids.
    prompt_ids = jax.random.randint(k_prompt_ids, (BATCH, PROMPT_LENGTH), 0, PROMPT_LENGTH)
    normal_ids = jax.random.randint(k_normal_ids, (BATCH, SEQ - PROMPT_LENGTH), 0, VOCAB_SIZE)
    input_ids = jnp.concatenate([prompt_ids, normal_ids], axis=1).astype(jnp.int32)

    out = prompt_embedding_forward(input_ids, prompt_weight, normal_weight, PROMPT_LENGTH)
    out = jax.block_until_ready(out)

    # Pure-JAX reference of the PyTorch forward (split -> embed -> concat).
    ref = jnp.concatenate(
        [
            jnp.take(prompt_weight, input_ids[:, :PROMPT_LENGTH], axis=0),
            jnp.take(normal_weight, input_ids[:, PROMPT_LENGTH:], axis=0),
        ],
        axis=1,
    )

    assert out.shape == (BATCH, SEQ, EMBED_DIM) and out.dtype == jnp.float32
    assert jnp.allclose(out, ref), "Pallas output mismatch vs reference"
    print("KERNEL_OK")
</pallas_src>

<mosaic_0001>
module attributes {stable_mosaic.version = 11 : i64} {
  func.func @_gather_tile_kernel(%arg0: i32, %arg1: memref<16xi32, #tpu.memory_space<smem>>, %arg2: memref<68x32xf32, #tpu.memory_space<any>>, %arg3: memref<16x32xf32, #tpu.memory_space<vmem>>, %arg4: memref<16x32xf32, #tpu.memory_space<vmem>>, %arg5: memref<8x!tpu.dma_semaphore, #tpu.memory_space<semaphore_mem>>) attributes {dimension_semantics = [#tpu.dimension_semantics<parallel>], iteration_bounds = array<i64: 1>, scalar_prefetch = 1 : i64, scratch_operands = 2 : i64, tpu.core_type = #tpu.core_type<tc>, window_params = [{}, {transform_indices = @transform_1, window_bounds = array<i64: 16, 32>}]} {
    %c16_i32 = arith.constant 16 : i32
    %0 = arith.muli %arg0, %c16_i32 : i32
    %c0_i32 = arith.constant 0 : i32
    %1 = arith.addi %0, %c0_i32 : i32
    %2 = arith.index_cast %1 : i32 to index
    %3 = memref.load %arg1[%2] : memref<16xi32, #tpu.memory_space<smem>>
    %c0_i32_0 = arith.constant 0 : i32
    %c0_i32_1 = arith.constant 0 : i32
    %4 = tpu.memref_slice %arg2[%3, %c0_i32_1] : memref<68x32xf32, #tpu.memory_space<any>> -> memref<1x32xf32, #tpu.memory_space<any>>
    %c0_i32_2 = arith.constant 0 : i32
    %c0_i32_3 = arith.constant 0 : i32
    %5 = tpu.memref_slice %arg4[%c0_i32_2, %c0_i32_3] : memref<16x32xf32, #tpu.memory_space<vmem>> -> memref<1x32xf32, #tpu.memory_space<vmem>>
    %6 = tpu.memref_slice %arg5[%c0_i32_0] : memref<8x!tpu.dma_semaphore, #tpu.memory_space<semaphore_mem>> -> memref<1x!tpu.dma_semaphore, #tpu.memory_space<semaphore_mem>>
    %7 = tpu.memref_squeeze %6 : memref<1x!tpu.dma_semaphore, #tpu.memory_space<semaphore_mem>> -> memref<!tpu.dma_semaphore, #tpu.memory_space<semaphore_mem>>
    tpu.enqueue_dma source(%4 : memref<1x32xf32, #tpu.memory_space<any>>) target(%5 : memref<1x32xf32, #tpu.memory_space<vmem>>) target_semaphore(%7 : memref<!tpu.dma_semaphore, #tpu.memory_space<semaphore_mem>>)
    %c1_i32 = arith.constant 1 : i32
    %8 = arith.addi %0, %c1_i32 : i32
    %9 = arith.index_cast %8 : i32 to index
    %10 = memref.load %arg1[%9] : memref<16xi32, #tpu.memory_space<smem>>
    %c1_i32_4 = arith.constant 1 : i32
    %c0_i32_5 = arith.constant 0 : i32
    %11 = tpu.memref_slice %arg2[%10, %c0_i32_5] : memref<68x32xf32, #tpu.memory_space<any>> -> memref<1x32xf32, #tpu.memory_space<any>>
    %c1_i32_6 = arith.constant 1 : i32
    %c0_i32_7 = arith.constant 0 : i32
    %12 = tpu.memref_slice %arg4[%c1_i32_6, %c0_i32_7] : memref<16x32xf32, #tpu.memory_space<vmem>> -> memref<1x32xf32, #tpu.memory_space<vmem>>
    %13 = tpu.memref_slice %arg5[%c1_i32_4] : memref<8x!tpu.dma_semaphore, #tpu.memory_space<semaphore_mem>> -> memref<1x!tpu.dma_semaphore, #tpu.memory_space<semaphore_mem>>
    %14 = tpu.memref_squeeze %13 : memref<1x!tpu.dma_semaphore, #tpu.memory_space<semaphore_mem>> -> memref<!tpu.dma_semaphore, #tpu.memory_space<semaphore_mem>>
    tpu.enqueue_dma source(%11 : memref<1x32xf32, #tpu.memory_space<any>>) target(%12 : memref<1x32xf32, #tpu.memory_space<vmem>>) target_semaphore(%14 : memref<!tpu.dma_semaphore, #tpu.memory_space<semaphore_mem>>)
    %c2_i32 = arith.constant 2 : i32
    %15 = arith.addi %0, %c2_i32 : i32
    %16 = arith.index_cast %15 : i32 to index
    %17 = memref.load %arg1[%16] : memref<16xi32, #tpu.memory_space<smem>>
    %c2_i32_8 = arith.constant 2 : i32
    %c0_i32_9 = arith.constant 0 : i32
    %18 = tpu.memref_slice %arg2[%17, %c0_i32_9] : memref<68x32xf32, #tpu.memory_space<any>> -> memref<1x32xf32, #tpu.memory_space<any>>
    %c2_i32_10 = arith.constant 2 : i32
    %c0_i32_11 = arith.constant 0 : i32
    %19 = tpu.memref_slice %arg4[%c2_i32_10, %c0_i32_11] : memref<16x32xf32, #tpu.memory_space<vmem>> -> memref<1x32xf32, #tpu.memory_space<vmem>>
    %20 = tpu.memref_slice %arg5[%c2_i32_8] : memref<8x!tpu.dma_semaphore, #tpu.memory_space<semaphore_mem>> -> memref<1x!tpu.dma_semaphore, #tpu.memory_space<semaphore_mem>>
    %21 = tpu.memref_squeeze %20 : memref<1x!tpu.dma_semaphore, #tpu.memory_space<semaphore_mem>> -> memref<!tpu.dma_semaphore, #tpu.memory_space<semaphore_mem>>
    tpu.enqueue_dma source(%18 : memref<1x32xf32, #tpu.memory_space<any>>) target(%19 : memref<1x32xf32, #tpu.memory_space<vmem>>) target_semaphore(%21 : memref<!tpu.dma_semaphore, #tpu.memory_space<semaphore_mem>>)
    %c3_i32 = arith.constant 3 : i32
    %22 = arith.addi %0, %c3_i32 : i32
    %23 = arith.index_cast %22 : i32 to index
    %24 = memref.load %arg1[%23] : memref<16xi32, #tpu.memory_space<smem>>
    %c3_i32_12 = arith.constant 3 : i32
    %c0_i32_13 = arith.constant 0 : i32
    %25 = tpu.memref_slice %arg2[%24, %c0_i32_13] : memref<68x32xf32, #tpu.memory_space<any>> -> memref<1x32xf32, #tpu.memory_space<any>>
    %c3_i32_14 = arith.constant 3 : i32
    %c0_i32_15 = arith.constant 0 : i32
    %26 = tpu.memref_slice %arg4[%c3_i32_14, %c0_i32_15] : memref<16x32xf32, #tpu.memory_space<vmem>> -> memref<1x32xf32, #tpu.memory_space<vmem>>
    %27 = tpu.memref_slice %arg5[%c3_i32_12] : memref<8x!tpu.dma_semaphore, #tpu.memory_space<semaphore_mem>> -> memref<1x!tpu.dma_semaphore, #tpu.memory_space<semaphore_mem>>
    %28 = tpu.memref_squeeze %27 : memref<1x!tpu.dma_semaphore, #tpu.memory_space<semaphore_mem>> -> memref<!tpu.dma_semaphore, #tpu.memory_space<semaphore_mem>>
    tpu.enqueue_dma source(%25 : memref<1x32xf32, #tpu.memory_space<any>>) target(%26 : memref<1x32xf32, #tpu.memory_space<vmem>>) target_semaphore(%28 : memref<!tpu.dma_semaphore, #tpu.memory_space<semaphore_mem>>)
    %c4_i32 = arith.constant 4 : i32
    %29 = arith.addi %0, %c4_i32 : i32
    %30 = arith.index_cast %29 : i32 to index
    %31 = memref.load %arg1[%30] : memref<16xi32, #tpu.memory_space<smem>>
    %c4_i32_16 = arith.constant 4 : i32
    %c0_i32_17 = arith.constant 0 : i32
    %32 = tpu.memref_slice %arg2[%31, %c0_i32_17] : memref<68x32xf32, #tpu.memory_space<any>> -> memref<1x32xf32, #tpu.memory_space<any>>
    %c4_i32_18 = arith.constant 4 : i32
    %c0_i32_19 = arith.constant 0 : i32
    %33 = tpu.memref_slice %arg4[%c4_i32_18, %c0_i32_19] : memref<16x32xf32, #tpu.memory_space<vmem>> -> memref<1x32xf32, #tpu.memory_space<vmem>>
    %34 = tpu.memref_slice %arg5[%c4_i32_16] : memref<8x!tpu.dma_semaphore, #tpu.memory_space<semaphore_mem>> -> memref<1x!tpu.dma_semaphore, #tpu.memory_space<semaphore_mem>>
    %35 = tpu.memref_squeeze %34 : memref<1x!tpu.dma_semaphore, #tpu.memory_space<semaphore_mem>> -> memref<!tpu.dma_semaphore, #tpu.memory_space<semaphore_mem>>
    tpu.enqueue_dma source(%32 : memref<1x32xf32, #tpu.memory_space<any>>) target(%33 : memref<1x32xf32, #tpu.memory_space<vmem>>) target_semaphore(%35 : memref<!tpu.dma_semaphore, #tpu.memory_space<semaphore_mem>>)
    %c5_i32 = arith.constant 5 : i32
    %36 = arith.addi %0, %c5_i32 : i32
    %37 = arith.index_cast %36 : i32 to index
    %38 = memref.load %arg1[%37] : memref<16xi32, #tpu.memory_space<smem>>
    %c5_i32_20 = arith.constant 5 : i32
    %c0_i32_21 = arith.constant 0 : i32
    %39 = tpu.memref_slice %arg2[%38, %c0_i32_21] : memref<68x32xf32, #tpu.memory_space<any>> -> memref<1x32xf32, #tpu.memory_space<any>>
    %c5_i32_22 = arith.constant 5 : i32
    %c0_i32_23 = arith.constant 0 : i32
    %40 = tpu.memref_slice %arg4[%c5_i32_22, %c0_i32_23] : memref<16x32xf32, #tpu.memory_space<vmem>> -> memref<1x32xf32, #tpu.memory_space<vmem>>
    %41 = tpu.memref_slice %arg5[%c5_i32_20] : memref<8x!tpu.dma_semaphore, #tpu.memory_space<semaphore_mem>> -> memref<1x!tpu.dma_semaphore, #tpu.memory_space<semaphore_mem>>
    %42 = tpu.memref_squeeze %41 : memref<1x!tpu.dma_semaphore, #tpu.memory_space<semaphore_mem>> -> memref<!tpu.dma_semaphore, #tpu.memory_space<semaphore_mem>>
    tpu.enqueue_dma source(%39 : memref<1x32xf32, #tpu.memory_space<any>>) target(%40 : memref<1x32xf32, #tpu.memory_space<vmem>>) target_semaphore(%42 : memref<!tpu.dma_semaphore, #tpu.memory_space<semaphore_mem>>)
    %c6_i32 = arith.constant 6 : i32
    %43 = arith.addi %0, %c6_i32 : i32
    %44 = arith.index_cast %43 : i32 to index
    %45 = memref.load %arg1[%44] : memref<16xi32, #tpu.memory_space<smem>>
    %c6_i32_24 = arith.constant 6 : i32
    %c0_i32_25 = arith.constant 0 : i32
    %46 = tpu.memref_slice %arg2[%45, %c0_i32_25] : memref<68x32xf32, #tpu.memory_space<any>> -> memref<1x32xf32, #tpu.memory_space<any>>
    %c6_i32_26 = arith.constant 6 : i32
    %c0_i32_27 = arith.constant 0 : i32
    %47 = tpu.memref_slice %arg4[%c6_i32_26, %c0_i32_27] : memref<16x32xf32, #tpu.memory_space<vmem>> -> memref<1x32xf32, #tpu.memory_space<vmem>>
    %48 = tpu.memref_slice %arg5[%c6_i32_24] : memref<8x!tpu.dma_semaphore, #tpu.memory_space<semaphore_mem>> -> memref<1x!tpu.dma_semaphore, #tpu.memory_space<semaphore_mem>>
    %49 = tpu.memref_squeeze %48 : memref<1x!tpu.dma_semaphore, #tpu.memory_space<semaphore_mem>> -> memref<!tpu.dma_semaphore, #tpu.memory_space<semaphore_mem>>
    tpu.enqueue_dma source(%46 : memref<1x32xf32, #tpu.memory_space<any>>) target(%47 : memref<1x32xf32, #tpu.memory_space<vmem>>) target_semaphore(%49 : memref<!tpu.dma_semaphore, #tpu.memory_space<semaphore_mem>>)
    %c7_i32 = arith.constant 7 : i32
    %50 = arith.addi %0, %c7_i32 : i32
    %51 = arith.index_cast %50 : i32 to index
    %52 = memref.load %arg1[%51] : memref<16xi32, #tpu.memory_space<smem>>
    %c7_i32_28 = arith.constant 7 : i32
    %c0_i32_29 = arith.constant 0 : i32
    %53 = tpu.memref_slice %arg2[%52, %c0_i32_29] : memref<68x32xf32, #tpu.memory_space<any>> -> memref<1x32xf32, #tpu.memory_space<any>>
    %c7_i32_30 = arith.constant 7 : i32
    %c0_i32_31 = arith.constant 0 : i32
    %54 = tpu.memref_slice %arg4[%c7_i32_30, %c0_i32_31] : memref<16x32xf32, #tpu.memory_space<vmem>> -> memref<1x32xf32, #tpu.memory_space<vmem>>
    %55 = tpu.memref_slice %arg5[%c7_i32_28] : memref<8x!tpu.dma_semaphore, #tpu.memory_space<semaphore_mem>> -> memref<1x!tpu.dma_semaphore, #tpu.memory_space<semaphore_mem>>
    %56 = tpu.memref_squeeze %55 : memref<1x!tpu.dma_semaphore, #tpu.memory_space<semaphore_mem>> -> memref<!tpu.dma_semaphore, #tpu.memory_space<semaphore_mem>>
    tpu.enqueue_dma source(%53 : memref<1x32xf32, #tpu.memory_space<any>>) target(%54 : memref<1x32xf32, #tpu.memory_space<vmem>>) target_semaphore(%56 : memref<!tpu.dma_semaphore, #tpu.memory_space<semaphore_mem>>)
    %c0_i32_32 = arith.constant 0 : i32
    %c16_i32_33 = arith.constant 16 : i32
    %57 = arith.addi %c0_i32_32, %c16_i32_33 : i32
    %c1_i32_34 = arith.constant 1 : i32
    scf.for %arg6 = %c0_i32_32 to %57 step %c1_i32_34  : i32 {
      %c1_i32_39 = arith.constant 1 : i32
      %60 = arith.muli %arg6, %c1_i32_39 : i32
      %c0_i32_40 = arith.constant 0 : i32
      %61 = arith.addi %c0_i32_40, %60 : i32
      %c8_i32 = arith.constant 8 : i32
      %c0_i32_41 = arith.constant 0 : i32
      %62 = arith.cmpi eq, %c8_i32, %c0_i32_41 : i32
      %c1_i32_42 = arith.constant 1 : i32
      %63 = arith.select %62, %c1_i32_42, %c8_i32 : i32
      %64 = arith.remsi %61, %63 : i32
      %c0_i32_43 = arith.constant 0 : i32
      %65 = arith.cmpi ne, %64, %c0_i32_43 : i32
      %c0_i32_44 = arith.constant 0 : i32
      %66 = arith.cmpi slt, %64, %c0_i32_44 : i32
      %c0_i32_45 = arith.constant 0 : i32
      %67 = arith.cmpi slt, %63, %c0_i32_45 : i32
      %68 = arith.xori %66, %67 : i1
      %69 = arith.andi %68, %65 : i1
      %70 = arith.addi %64, %63 : i32
      %71 = arith.select %69, %70, %64 : i32
      %c0_i32_46 = arith.constant 0 : i32
      %c0_i32_47 = arith.constant 0 : i32
      %72 = tpu.memref_slice %arg2[%c0_i32_46, %c0_i32_47] : memref<68x32xf32, #tpu.memory_space<any>> -> memref<1x32xf32, #tpu.memory_space<any>>
      %c0_i32_48 = arith.constant 0 : i32
      %73 = tpu.memref_slice %arg4[%61, %c0_i32_48] : memref<16x32xf32, #tpu.memory_space<vmem>> -> memref<1x32xf32, #tpu.memory_space<vmem>>
      %74 = tpu.memref_slice %arg5[%71] : memref<8x!tpu.dma_semaphore, #tpu.memory_space<semaphore_mem>> -> memref<1x!tpu.dma_semaphore, #tpu.memory_space<semaphore_mem>>
      %75 = tpu.memref_squeeze %74 : memref<1x!tpu.dma_semaphore, #tpu.memory_space<semaphore_mem>> -> memref<!tpu.dma_semaphore, #tpu.memory_space<semaphore_mem>>
      tpu.wait_dma2 semaphore(%75 : memref<!tpu.dma_semaphore, #tpu.memory_space<semaphore_mem>>) src(%72 : memref<1x32xf32, #tpu.memory_space<any>>) dst(%73 : memref<1x32xf32, #tpu.memory_space<vmem>>)
      %c8_i32_49 = arith.constant 8 : i32
      %76 = arith.addi %61, %c8_i32_49 : i32
      %c16_i32_50 = arith.constant 16 : i32
      %77 = arith.cmpi slt, %76, %c16_i32_50 : i32
      %78 = arith.extui %77 : i1 to i32
      %c0_i32_51 = arith.constant 0 : i32
      %79 = arith.cmpi ne, %78, %c0_i32_51 : i32
      scf.if %79 {
        %c8_i32_52 = arith.constant 8 : i32
        %80 = arith.addi %61, %c8_i32_52 : i32
        %81 = arith.addi %0, %80 : i32
        %82 = arith.index_cast %81 : i32 to index
        %83 = memref.load %arg1[%82] : memref<16xi32, #tpu.memory_space<smem>>
        %c8_i32_53 = arith.constant 8 : i32
        %c0_i32_54 = arith.constant 0 : i32
        %84 = arith.cmpi eq, %c8_i32_53, %c0_i32_54 : i32
        %c1_i32_55 = arith.constant 1 : i32
        %85 = arith.select %84, %c1_i32_55, %c8_i32_53 : i32
        %86 = arith.remsi %80, %85 : i32
        %c0_i32_56 = arith.constant 0 : i32
        %87 = arith.cmpi ne, %86, %c0_i32_56 : i32
        %c0_i32_57 = arith.constant 0 : i32
        %88 = arith.cmpi slt, %86, %c0_i32_57 : i32
        %c0_i32_58 = arith.constant 0 : i32
        %89 = arith.cmpi slt, %85, %c0_i32_58 : i32
        %90 = arith.xori %88, %89 : i1
        %91 = arith.andi %90, %87 : i1
        %92 = arith.addi %86, %85 : i32
        %93 = arith.select %91, %92, %86 : i32
        %c0_i32_59 = arith.constant 0 : i32
        %94 = tpu.memref_slice %arg2[%83, %c0_i32_59] : memref<68x32xf32, #tpu.memory_space<any>> -> memref<1x32xf32, #tpu.memory_space<any>>
        %c0_i32_60 = arith.constant 0 : i32
        %95 = tpu.memref_slice %arg4[%80, %c0_i32_60] : memref<16x32xf32, #tpu.memory_space<vmem>> -> memref<1x32xf32, #tpu.memory_space<vmem>>
        %96 = tpu.memref_slice %arg5[%93] : memref<8x!tpu.dma_semaphore, #tpu.memory_space<semaphore_mem>> -> memref<1x!tpu.dma_semaphore, #tpu.memory_space<semaphore_mem>>
        %97 = tpu.memref_squeeze %96 : memref<1x!tpu.dma_semaphore, #tpu.memory_space<semaphore_mem>> -> memref<!tpu.dma_semaphore, #tpu.memory_space<semaphore_mem>>
        tpu.enqueue_dma source(%94 : memref<1x32xf32, #tpu.memory_space<any>>) target(%95 : memref<1x32xf32, #tpu.memory_space<vmem>>) target_semaphore(%97 : memref<!tpu.dma_semaphore, #tpu.memory_space<semaphore_mem>>)
      } else {
      }
    }
    %c16_i32_35 = arith.constant 16 : i32
    %c0 = arith.constant 0 : index
    %c0_36 = arith.constant 0 : index
    %58 = vector.load %arg4[%c0, %c0_36] : memref<16x32xf32, #tpu.memory_space<vmem>>, vector<16x32xf32>
    %c0_37 = arith.constant 0 : index
    %c0_38 = arith.constant 0 : index
    %59 = vector.load %arg3[%c0_37, %c0_38] : memref<16x32xf32, #tpu.memory_space<vmem>>, vector<16x32xf32>
    tpu.vector_store %arg3[%c0_37, %c0_38], %58 {strides = array<i32>} : memref<16x32xf32, #tpu.memory_space<vmem>>, vector<16x32xf32>,
    return
  }
  func.func @transform_1(%arg0: i32, %arg1: memref<16xi32, #tpu.memory_space<smem>>) -> (i32, i32) {
    %c0_i32 = arith.constant 0 : i32
    %c0_i32_0 = arith.constant 0 : i32
    return %arg0, %c0_i32 : i32, i32
  }
}

</mosaic_0001>

<llo_original>
// kernel: tpu_custom_call.1
$region0: #{tpu_custom_call.1}
  #allocation0 [shape = 'u32[]', space=smem, size = 0x4, offset = 0x4, fixed_abs, tag = 'smem constant byte address 0x4 - core index']
  #allocation1 [shape = 'u32[72,128]{1,0:T(1,128)}', space=vmem, size = 0x9000, scoped, tag = 'internal scratch']
  #allocation2 [shape = 'f32[16,32]{1,0:T(8,128)}', space=vmem, size = 0x2000, scoped, tag = 'scratch operand']
  #allocation3 [shape = 's32[8]{0}', space=sflag, size = 0x20, scoped, tag = 'scratch operand']
  #allocation4 [shape = 's32[1]{0}', space=sflag, size = 0x4, scoped, tag = 'scoped memory for tpu_custom_call.1']
  #allocation5 [shape = 'u8[512]{0}', space=smem, size = 0x200, scoped, tag = 'prefetched SMEM operand 0']
  #allocation8 [shape = 's32[]', space=sflag, size = 0x4, offset = 0, fixed_abs, tag = 'sflag constant byte address 0x0 - dummy sync flag']
  #allocation9 [shape = 's32[]', space=sflag, size = 0x4, offset = 0, fixed_abs, tag = 'sflag constant byte address 0x0 - dummy sync flag']
  #allocation10 [shape = 's32[]', space=sflag, size = 0x4, offset = 0, fixed_abs, tag = 'sflag constant byte address 0x0 - dummy sync flag']
  #allocation11 [shape = 's32[]', space=sflag, size = 0x4, offset = 0, fixed_abs, tag = 'sflag constant byte address 0x0 - dummy sync flag']
  #allocation12 [shape = 's32[]', space=sflag, size = 0x4, offset = 0, fixed_abs, tag = 'sflag constant byte address 0x0 - dummy sync flag']
  #allocation13 [shape = 's32[]', space=sflag, size = 0x4, offset = 0, fixed_abs, tag = 'sflag constant byte address 0x0 - dummy sync flag']
  #allocation14 [shape = 's32[]', space=sflag, size = 0x4, offset = 0, fixed_abs, tag = 'sflag constant byte address 0x0 - dummy sync flag']
  #allocation15 [shape = 's32[]', space=sflag, size = 0x4, offset = 0, fixed_abs, tag = 'sflag constant byte address 0x0 - dummy sync flag']
  #allocation16 [shape = 's32[]', space=sflag, size = 0x4, offset = 0, fixed_abs, tag = 'sflag constant byte address 0x0 - dummy sync flag']
  %s0 = inlined_call_operand.vmem [shape: s32[16], index: 0, kind: input, shape index: {}]
  %s1 = inlined_call_operand.vmem [shape: f32[68,32], index: 1, kind: input, shape index: {}]
  %s2 = inlined_call_operand.hbm [shape: f32[16,32], index: 2, kind: output, shape index: {}]
  %s3 = sld [smem:[#allocation0]]
  $region291: #{tpu_custom_call.1} parent=0
    _
  %s5 = ssub.s32 1, %s3
  %s6 = scalar_select 0, %s5, %s3
  %s8 = sshll.u32 %s0, 4
  %s9 = int_to_ptr.vmem [resolvable:$true] %s8
  %11 = dma.vmem_to_smem %s9, 16, [#allocation5], [#allocation4]
  %13 = dma.done [#allocation4], 16
  %14 = sfence
  $region1: #{tpu_custom_call.1} parent=0
    #allocation6 [shape = 'u8[8192]{0}', space=vmem, size = 0x2000, scoped, tag = 'output window, operand 0, single buffered']
    #allocation7 [shape = 's32[1]{0}', space=sflag, size = 0x4, scoped, tag = 'scoped memory for tpu_custom_call.1']
    %15 = vsyncpa [#allocation7], 0
    %s16 = smul.u32 0, 16
    %s17 = sld [smem:[#allocation5 + %s16]]
    %s18 = scalar_lea.vmem %s1, %s17
    // Predicated region
    $region2: #{tpu_custom_call.1} parent=1 // pred_check
      _
    $region3: #{tpu_custom_call.1} parent=1 // pred_check_branch
      %20 = sbr.rel target = $region5
    $region4: #{tpu_custom_call.1} parent=1 // pred_region
      // Predicated region
      $region17: #{tpu_custom_call.1} parent=4 // pred_check
        _
      $region18: #{tpu_custom_call.1} parent=4 // pred_check_branch
        %36 = sbr.rel (0) target = $region20
      $region19: #{tpu_custom_call.1} parent=4 // pred_region
        %s38 = ssub.s32 2, 1
        loop: start=0, step=1, limit=1
        $region21: #{tpu_custom_call.1} parent=19 // loop_pre_header
          _
        $region22: #{tpu_custom_call.1} parent=19 // loop_header
          %s40 = sphi 0, %s44
          %p41 = scmp.ge.s32.totalorder %s40, 1
          %s45 = sphi %s18, %s18
          %s46 = sphi [#allocation2], [#allocation2]
        $region23: #{tpu_custom_call.1} parent=19 // loop_header_branch
          %43 = sbr.rel (%p41) target = $region27
        $region24: #{tpu_custom_call.1} parent=19 // loop_body
          %v47 = vld [vmem:[%s45] sm:%s38]
          %48 = vst [vmem:[%s46] sm:%s38] %v47
        $region25: #{tpu_custom_call.1} parent=19 // loop_footer
          %s44 = sadd.s32 1, %s40
        $region26: #{tpu_custom_call.1} parent=19 // loop_footer_branch
          %39 = sbr.rel target = $region22
        $region27: #{tpu_custom_call.1} parent=19 // loop_exit
          _
      $region20: #{tpu_custom_call.1} parent=4 // pred_fallthru
        _
    $region5: #{tpu_custom_call.1} parent=1 // pred_fallthru
      _
    // Predicated region
    $region6: #{tpu_custom_call.1} parent=1 // pred_check
      _
    $region7: #{tpu_custom_call.1} parent=1 // pred_check_branch
      %22 = sbr.rel (0) target = $region9
    $region8: #{tpu_custom_call.1} parent=1 // pred_region
      %s24 = ssub.s32 2, 1
      loop: start=0, step=1, limit=1
      $region10: #{tpu_custom_call.1} parent=8 // loop_pre_header
        _
      $region11: #{tpu_custom_call.1} parent=8 // loop_header
        %s26 = sphi 0, %s30
        %p27 = scmp.ge.s32.totalorder %s26, 1
        %s31 = sphi %s18, %s18
        %s32 = sphi [#allocation2], [#allocation2]
      $region12: #{tpu_custom_call.1} parent=8 // loop_header_branch
        %29 = sbr.rel (%p27) target = $region16
      $region13: #{tpu_custom_call.1} parent=8 // loop_body
        %v33 = vld [vmem:[%s31] sm:%s24]
        %34 = vst [vmem:[%s32] sm:%s24] %v33
      $region14: #{tpu_custom_call.1} parent=8 // loop_footer
        %s30 = sadd.s32 1, %s26
      $region15: #{tpu_custom_call.1} parent=8 // loop_footer_branch
        %25 = sbr.rel target = $region11
      $region16: #{tpu_custom_call.1} parent=8 // loop_exit
        _
    $region9: #{tpu_custom_call.1} parent=1 // pred_fallthru
      _
    // Predicated region
    $region28: #{tpu_custom_call.1} parent=1 // pred_check
      _
    $region29: #{tpu_custom_call.1} parent=1 // pred_check_branch
      %51 = sbr.rel (0) target = $region31
    $region30: #{tpu_custom_call.1} parent=1 // pred_region
      %52 = vsyncadd [#allocation3], 16
    $region31: #{tpu_custom_call.1} parent=1 // pred_fallthru
      _
    %s53 = sadd.s32 %s16, 1
    %s54 = sld [smem:[#allocation5 + %s53]]
    %s55 = scalar_lea.vmem %s1, %s54
    %s56 = scalar_lea.vmem [#allocation2], 1
    %s57 = scalar_lea.sflag [#allocation3], 1
    // Predicated region
    $region32: #{tpu_custom_call.1} parent=1 // pred_check
      _
    $region33: #{tpu_custom_call.1} parent=1 // pred_check_branch
      %59 = sbr.rel target = $region35
    $region34: #{tpu_custom_call.1} parent=1 // pred_region
      // Predicated region
      $region47: #{tpu_custom_call.1} parent=34 // pred_check
        _
      $region48: #{tpu_custom_call.1} parent=34 // pred_check_branch
        %75 = sbr.rel (0) target = $region50
      $region49: #{tpu_custom_call.1} parent=34 // pred_region
        %s77 = ssub.s32 2, 1
        loop: start=0, step=1, limit=1
        $region51: #{tpu_custom_call.1} parent=49 // loop_pre_header
          _
        $region52: #{tpu_custom_call.1} parent=49 // loop_header
          %s79 = sphi 0, %s83
          %p80 = scmp.ge.s32.totalorder %s79, 1
          %s84 = sphi %s55, %s55
          %s85 = sphi %s56, %s56
        $region53: #{tpu_custom_call.1} parent=49 // loop_header_branch
          %82 = sbr.rel (%p80) target = $region57
        $region54: #{tpu_custom_call.1} parent=49 // loop_body
          %v86 = vld [vmem:[%s84] sm:%s77]
          %87 = vst [vmem:[%s85] sm:%s77] %v86
        $region55: #{tpu_custom_call.1} parent=49 // loop_footer
          %s83 = sadd.s32 1, %s79
        $region56: #{tpu_custom_call.1} parent=49 // loop_footer_branch
          %78 = sbr.rel target = $region52
        $region57: #{tpu_custom_call.1} parent=49 // loop_exit
          _
      $region50: #{tpu_custom_call.1} parent=34 // pred_fallthru
        _
    $region35: #{tpu_custom_call.1} parent=1 // pred_fallthru
      _
    // Predicated region
    $region36: #{tpu_custom_call.1} parent=1 // pred_check
      _
    $region37: #{tpu_custom_call.1} parent=1 // pred_check_branch
      %61 = sbr.rel (0) target = $region39
    $region38: #{tpu_custom_call.1} parent=1 // pred_region
      %s63 = ssub.s32 2, 1
      loop: start=0, step=1, limit=1
      $region40: #{tpu_custom_call.1} parent=38 // loop_pre_header
        _
      $region41: #{tpu_custom_call.1} parent=38 // loop_header
        %s65 = sphi 0, %s69
        %p66 = scmp.ge.s32.totalorder %s65, 1
        %s70 = sphi %s55, %s55
        %s71 = sphi %s56, %s56
      $region42: #{tpu_custom_call.1} parent=38 // loop_header_branch
        %68 = sbr.rel (%p66) target = $region46
      $region43: #{tpu_custom_call.1} parent=38 // loop_body
        %v72 = vld [vmem:[%s70] sm:%s63]
        %73 = vst [vmem:[%s71] sm:%s63] %v72
      $region44: #{tpu_custom_call.1} parent=38 // loop_footer
        %s69 = sadd.s32 1, %s65
      $region45: #{tpu_custom_call.1} parent=38 // loop_footer_branch
        %64 = sbr.rel target = $region41
      $region46: #{tpu_custom_call.1} parent=38 // loop_exit
        _
    $region39: #{tpu_custom_call.1} parent=1 // pred_fallthru
      _
    // Predicated region
    $region58: #{tpu_custom_call.1} parent=1 // pred_check
      _
    $region59: #{tpu_custom_call.1} parent=1 // pred_check_branch
      %90 = sbr.rel (0) target = $region61
    $region60: #{tpu_custom_call.1} parent=1 // pred_region
      %91 = vsyncadd %s57, 16
    $region61: #{tpu_custom_call.1} parent=1 // pred_fallthru
      _
    %s92 = sadd.s32 %s16, 2
    %s93 = sld [smem:[#allocation5 + %s92]]
    %s94 = scalar_lea.vmem %s1, %s93
    %s95 = scalar_lea.vmem [#allocation2], 2
    %s96 = scalar_lea.sflag [#allocation3], 2
    // Predicated region
    $region62: #{tpu_custom_call.1} parent=1 // pred_check
      _
    $region63: #{tpu_custom_call.1} parent=1 // pred_check_branch
      %98 = sbr.rel target = $region65
    $region64: #{tpu_custom_call.1} parent=1 // pred_region
      // Predicated region
      $region77: #{tpu_custom_call.1} parent=64 // pred_check
        _
      $region78: #{tpu_custom_call.1} parent=64 // pred_check_branch
        %114 = sbr.rel (0) target = $region80
      $region79: #{tpu_custom_call.1} parent=64 // pred_region
        %s116 = ssub.s32 2, 1
        loop: start=0, step=1, limit=1
        $region81: #{tpu_custom_call.1} parent=79 // loop_pre_header
          _
        $region82: #{tpu_custom_call.1} parent=79 // loop_header
          %s118 = sphi 0, %s122
          %p119 = scmp.ge.s32.totalorder %s118, 1
          %s123 = sphi %s94, %s94
          %s124 = sphi %s95, %s95
        $region83: #{tpu_custom_call.1} parent=79 // loop_header_branch
          %121 = sbr.rel (%p119) target = $region87
        $region84: #{tpu_custom_call.1} parent=79 // loop_body
          %v125 = vld [vmem:[%s123] sm:%s116]
          %126 = vst [vmem:[%s124] sm:%s116] %v125
        $region85: #{tpu_custom_call.1} parent=79 // loop_footer
          %s122 = sadd.s32 1, %s118
        $region86: #{tpu_custom_call.1} parent=79 // loop_footer_branch
          %117 = sbr.rel target = $region82
        $region87: #{tpu_custom_call.1} parent=79 // loop_exit
          _
      $region80: #{tpu_custom_call.1} parent=64 // pred_fallthru
        _
    $region65: #{tpu_custom_call.1} parent=1 // pred_fallthru
      _
    // Predicated region
    $region66: #{tpu_custom_call.1} parent=1 // pred_check
      _
    $region67: #{tpu_custom_call.1} parent=1 // pred_check_branch
      %100 = sbr.rel (0) target = $region69
    $region68: #{tpu_custom_call.1} parent=1 // pred_region
      %s102 = ssub.s32 2, 1
      loop: start=0, step=1, limit=1
      $region70: #{tpu_custom_call.1} parent=68 // loop_pre_header
        _
      $region71: #{tpu_custom_call.1} parent=68 // loop_header
        %s104 = sphi 0, %s108
        %p105 = scmp.ge.s32.totalorder %s104, 1
        %s109 = sphi %s94, %s94
        %s110 = sphi %s95, %s95
      $region72: #{tpu_custom_call.1} parent=68 // loop_header_branch
        %107 = sbr.rel (%p105) target = $region76
      $region73: #{tpu_custom_call.1} parent=68 // loop_body
        %v111 = vld [vmem:[%s109] sm:%s102]
        %112 = vst [vmem:[%s110] sm:%s102] %v111
      $region74: #{tpu_custom_call.1} parent=68 // loop_footer
        %s108 = sadd.s32 1, %s104
      $region75: #{tpu_custom_call.1} parent=68 // loop_footer_branch
        %103 = sbr.rel target = $region71
      $region76: #{tpu_custom_call.1} parent=68 // loop_exit
        _
    $region69: #{tpu_custom_call.1} parent=1 // pred_fallthru
      _
    // Predicated region
    $region88: #{tpu_custom_call.1} parent=1 // pred_check
      _
    $region89: #{tpu_custom_call.1} parent=1 // pred_check_branch
      %129 = sbr.rel (0) target = $region91
    $region90: #{tpu_custom_call.1} parent=1 // pred_region
      %130 = vsyncadd %s96, 16
    $region91: #{tpu_custom_call.1} parent=1 // pred_fallthru
      _
    %s131 = sadd.s32 %s16, 3
    %s132 = sld [smem:[#allocation5 + %s131]]
    %s133 = scalar_lea.vmem %s1, %s132
    %s134 = scalar_lea.vmem [#allocation2], 3
    %s135 = scalar_lea.sflag [#allocation3], 3
    // Predicated region
    $region92: #{tpu_custom_call.1} parent=1 // pred_check
      _
    $region93: #{tpu_custom_call.1} parent=1 // pred_check_branch
      %137 = sbr.rel target = $region95
    $region94: #{tpu_custom_call.1} parent=1 // pred_region
      // Predicated region
      $region107: #{tpu_custom_call.1} parent=94 // pred_check
        _
      $region108: #{tpu_custom_call.1} parent=94 // pred_check_branch
        %153 = sbr.rel (0) target = $region110
      $region109: #{tpu_custom_call.1} parent=94 // pred_region
        %s155 = ssub.s32 2, 1
        loop: start=0, step=1, limit=1
        $region111: #{tpu_custom_call.1} parent=109 // loop_pre_header
          _
        $region112: #{tpu_custom_call.1} parent=109 // loop_header
          %s157 = sphi 0, %s161
          %p158 = scmp.ge.s32.totalorder %s157, 1
          %s162 = sphi %s133, %s133
          %s163 = sphi %s134, %s134
        $region113: #{tpu_custom_call.1} parent=109 // loop_header_branch
          %160 = sbr.rel (%p158) target = $region117
        $region114: #{tpu_custom_call.1} parent=109 // loop_body
          %v164 = vld [vmem:[%s162] sm:%s155]
          %165 = vst [vmem:[%s163] sm:%s155] %v164
        $region115: #{tpu_custom_call.1} parent=109 // loop_footer
          %s161 = sadd.s32 1, %s157
        $region116: #{tpu_custom_call.1} parent=109 // loop_footer_branch
          %156 = sbr.rel target = $region112
        $region117: #{tpu_custom_call.1} parent=109 // loop_exit
          _
      $region110: #{tpu_custom_call.1} parent=94 // pred_fallthru
        _
    $region95: #{tpu_custom_call.1} parent=1 // pred_fallthru
      _
    // Predicated region
    $region96: #{tpu_custom_call.1} parent=1 // pred_check
      _
    $region97: #{tpu_custom_call.1} parent=1 // pred_check_branch
      %139 = sbr.rel (0) target = $region99
    $region98: #{tpu_custom_call.1} parent=1 // pred_region
      %s141 = ssub.s32 2, 1
      loop: start=0, step=1, limit=1
      $region100: #{tpu_custom_call.1} parent=98 // loop_pre_header
        _
      $region101: #{tpu_custom_call.1} parent=98 // loop_header
        %s143 = sphi 0, %s147
        %p144 = scmp.ge.s32.totalorder %s143, 1
        %s148 = sphi %s133, %s133
        %s149 = sphi %s134, %s134
      $region102: #{tpu_custom_call.1} parent=98 // loop_header_branch
        %146 = sbr.rel (%p144) target = $region106
      $region103: #{tpu_custom_call.1} parent=98 // loop_body
        %v150 = vld [vmem:[%s148] sm:%s141]
        %151 = vst [vmem:[%s149] sm:%s141] %v150
      $region104: #{tpu_custom_call.1} parent=98 // loop_footer
        %s147 = sadd.s32 1, %s143
      $region105: #{tpu_custom_call.1} parent=98 // loop_footer_branch
        %142 = sbr.rel target = $region101
      $region106: #{tpu_custom_call.1} parent=98 // loop_exit
        _
    $region99: #{tpu_custom_call.1} parent=1 // pred_fallthru
      _
    // Predicated region
    $region118: #{tpu_custom_call.1} parent=1 // pred_check
      _
    $region119: #{tpu_custom_call.1} parent=1 // pred_check_branch
      %168 = sbr.rel (0) target = $region121
    $region120: #{tpu_custom_call.1} parent=1 // pred_region
      %169 = vsyncadd %s135, 16
    $region121: #{tpu_custom_call.1} parent=1 // pred_fallthru
      _
    %s170 = sadd.s32 %s16, 4
    %s171 = sld [smem:[#allocation5 + %s170]]
    %s172 = scalar_lea.vmem %s1, %s171
    %s173 = scalar_lea.vmem [#allocation2], 4
    %s174 = scalar_lea.sflag [#allocation3], 4
    // Predicated region
    $region122: #{tpu_custom_call.1} parent=1 // pred_check
      _
    $region123: #{tpu_custom_call.1} parent=1 // pred_check_branch
      %176 = sbr.rel target = $region125
    $region124: #{tpu_custom_call.1} parent=1 // pred_region
      // Predicated region
      $region137: #{tpu_custom_call.1} parent=124 // pred_check
        _
      $region138: #{tpu_custom_call.1} parent=124 // pred_check_branch
        %192 = sbr.rel (0) target = $region140
      $region139: #{tpu_custom_call.1} parent=124 // pred_region
        %s194 = ssub.s32 2, 1
        loop: start=0, step=1, limit=1
        $region141: #{tpu_custom_call.1} parent=139 // loop_pre_header
          _
        $region142: #{tpu_custom_call.1} parent=139 // loop_header
          %s196 = sphi 0, %s200
          %p197 = scmp.ge.s32.totalorder %s196, 1
          %s201 = sphi %s172, %s172
          %s202 = sphi %s173, %s173
        $region143: #{tpu_custom_call.1} parent=139 // loop_header_branch
          %199 = sbr.rel (%p197) target = $region147
        $region144: #{tpu_custom_call.1} parent=139 // loop_body
          %v203 = vld [vmem:[%s201] sm:%s194]
          %204 = vst [vmem:[%s202] sm:%s194] %v203
        $region145: #{tpu_custom_call.1} parent=139 // loop_footer
          %s200 = sadd.s32 1, %s196
        $region146: #{tpu_custom_call.1} parent=139 // loop_footer_branch
          %195 = sbr.rel target = $region142
        $region147: #{tpu_custom_call.1} parent=139 // loop_exit
          _
      $region140: #{tpu_custom_call.1} parent=124 // pred_fallthru
        _
    $region125: #{tpu_custom_call.1} parent=1 // pred_fallthru
      _
    // Predicated region
    $region126: #{tpu_custom_call.1} parent=1 // pred_check
      _
    $region127: #{tpu_custom_call.1} parent=1 // pred_check_branch
      %178 = sbr.rel (0) target = $region129
    $region128: #{tpu_custom_call.1} parent=1 // pred_region
      %s180 = ssub.s32 2, 1
      loop: start=0, step=1, limit=1
      $region130: #{tpu_custom_call.1} parent=128 // loop_pre_header
        _
      $region131: #{tpu_custom_call.1} parent=128 // loop_header
        %s182 = sphi 0, %s186
        %p183 = scmp.ge.s32.totalorder %s182, 1
        %s187 = sphi %s172, %s172
        %s188 = sphi %s173, %s173
      $region132: #{tpu_custom_call.1} parent=128 // loop_header_branch
        %185 = sbr.rel (%p183) target = $region136
      $region133: #{tpu_custom_call.1} parent=128 // loop_body
        %v189 = vld [vmem:[%s187] sm:%s180]
        %190 = vst [vmem:[%s188] sm:%s180] %v189
      $region134: #{tpu_custom_call.1} parent=128 // loop_footer
        %s186 = sadd.s32 1, %s182
      $region135: #{tpu_custom_call.1} parent=128 // loop_footer_branch
        %181 = sbr.rel target = $region131
      $region136: #{tpu_custom_call.1} parent=128 // loop_exit
        _
    $region129: #{tpu_custom_call.1} parent=1 // pred_fallthru
      _
    // Predicated region
    $region148: #{tpu_custom_call.1} parent=1 // pred_check
      _
    $region149: #{tpu_custom_call.1} parent=1 // pred_check_branch
      %207 = sbr.rel (0) target = $region151
    $region150: #{tpu_custom_call.1} parent=1 // pred_region
      %208 = vsyncadd %s174, 16
    $region151: #{tpu_custom_call.1} parent=1 // pred_fallthru
      _
    %s209 = sadd.s32 %s16, 5
    %s210 = sld [smem:[#allocation5 + %s209]]
    %s211 = scalar_lea.vmem %s1, %s210
    %s212 = scalar_lea.vmem [#allocation2], 5
    %s213 = scalar_lea.sflag [#allocation3], 5
    // Predicated region
    $region152: #{tpu_custom_call.1} parent=1 // pred_check
      _
    $region153: #{tpu_custom_call.1} parent=1 // pred_check_branch
      %215 = sbr.rel target = $region155
    $region154: #{tpu_custom_call.1} parent=1 // pred_region
      // Predicated region
      $region167: #{tpu_custom_call.1} parent=154 // pred_check
        _
      $region168: #{tpu_custom_call.1} parent=154 // pred_check_branch
        %231 = sbr.rel (0) target = $region170
      $region169: #{tpu_custom_call.1} parent=154 // pred_region
        %s233 = ssub.s32 2, 1
        loop: start=0, step=1, limit=1
        $region171: #{tpu_custom_call.1} parent=169 // loop_pre_header
          _
        $region172: #{tpu_custom_call.1} parent=169 // loop_header
          %s235 = sphi 0, %s239
          %p236 = scmp.ge.s32.totalorder %s235, 1
          %s240 = sphi %s211, %s211
          %s241 = sphi %s212, %s212
        $region173: #{tpu_custom_call.1} parent=169 // loop_header_branch
          %238 = sbr.rel (%p236) target = $region177
        $region174: #{tpu_custom_call.1} parent=169 // loop_body
          %v242 = vld [vmem:[%s240] sm:%s233]
          %243 = vst [vmem:[%s241] sm:%s233] %v242
        $region175: #{tpu_custom_call.1} parent=169 // loop_footer
          %s239 = sadd.s32 1, %s235
        $region176: #{tpu_custom_call.1} parent=169 // loop_footer_branch
          %234 = sbr.rel target = $region172
        $region177: #{tpu_custom_call.1} parent=169 // loop_exit
          _
      $region170: #{tpu_custom_call.1} parent=154 // pred_fallthru
        _
    $region155: #{tpu_custom_call.1} parent=1 // pred_fallthru
      _
    // Predicated region
    $region156: #{tpu_custom_call.1} parent=1 // pred_check
      _
    $region157: #{tpu_custom_call.1} parent=1 // pred_check_branch
      %217 = sbr.rel (0) target = $region159
    $region158: #{tpu_custom_call.1} parent=1 // pred_region
      %s219 = ssub.s32 2, 1
      loop: start=0, step=1, limit=1
      $region160: #{tpu_custom_call.1} parent=158 // loop_pre_header
        _
      $region161: #{tpu_custom_call.1} parent=158 // loop_header
        %s221 = sphi 0, %s225
        %p222 = scmp.ge.s32.totalorder %s221, 1
        %s226 = sphi %s211, %s211
        %s227 = sphi %s212, %s212
      $region162: #{tpu_custom_call.1} parent=158 // loop_header_branch
        %224 = sbr.rel (%p222) target = $region166
      $region163: #{tpu_custom_call.1} parent=158 // loop_body
        %v228 = vld [vmem:[%s226] sm:%s219]
        %229 = vst [vmem:[%s227] sm:%s219] %v228
      $region164: #{tpu_custom_call.1} parent=158 // loop_footer
        %s225 = sadd.s32 1, %s221
      $region165: #{tpu_custom_call.1} parent=158 // loop_footer_branch
        %220 = sbr.rel target = $region161
      $region166: #{tpu_custom_call.1} parent=158 // loop_exit
        _
    $region159: #{tpu_custom_call.1} parent=1 // pred_fallthru
      _
    // Predicated region
    $region178: #{tpu_custom_call.1} parent=1 // pred_check
      _
    $region179: #{tpu_custom_call.1} parent=1 // pred_check_branch
      %246 = sbr.rel (0) target = $region181
    $region180: #{tpu_custom_call.1} parent=1 // pred_region
      %247 = vsyncadd %s213, 16
    $region181: #{tpu_custom_call.1} parent=1 // pred_fallthru
      _
    %s248 = sadd.s32 %s16, 6
    %s249 = sld [smem:[#allocation5 + %s248]]
    %s250 = scalar_lea.vmem %s1, %s249
    %s251 = scalar_lea.vmem [#allocation2], 6
    %s252 = scalar_lea.sflag [#allocation3], 6
    // Predicated region
    $region182: #{tpu_custom_call.1} parent=1 // pred_check
      _
    $region183: #{tpu_custom_call.1} parent=1 // pred_check_branch
      %254 = sbr.rel target = $region185
    $region184: #{tpu_custom_call.1} parent=1 // pred_region
      // Predicated region
      $region197: #{tpu_custom_call.1} parent=184 // pred_check
        _
      $region198: #{tpu_custom_call.1} parent=184 // pred_check_branch
        %270 = sbr.rel (0) target = $region200
      $region199: #{tpu_custom_call.1} parent=184 // pred_region
        %s272 = ssub.s32 2, 1
        loop: start=0, step=1, limit=1
        $region201: #{tpu_custom_call.1} parent=199 // loop_pre_header
          _
        $region202: #{tpu_custom_call.1} parent=199 // loop_header
          %s274 = sphi 0, %s278
          %p275 = scmp.ge.s32.totalorder %s274, 1
          %s279 = sphi %s250, %s250
          %s280 = sphi %s251, %s251
        $region203: #{tpu_custom_call.1} parent=199 // loop_header_branch
          %277 = sbr.rel (%p275) target = $region207
        $region204: #{tpu_custom_call.1} parent=199 // loop_body
          %v281 = vld [vmem:[%s279] sm:%s272]
          %282 = vst [vmem:[%s280] sm:%s272] %v281
        $region205: #{tpu_custom_call.1} parent=199 // loop_footer
          %s278 = sadd.s32 1, %s274
        $region206: #{tpu_custom_call.1} parent=199 // loop_footer_branch
          %273 = sbr.rel target = $region202
        $region207: #{tpu_custom_call.1} parent=199 // loop_exit
          _
      $region200: #{tpu_custom_call.1} parent=184 // pred_fallthru
        _
    $region185: #{tpu_custom_call.1} parent=1 // pred_fallthru
      _
    // Predicated region
    $region186: #{tpu_custom_call.1} parent=1 // pred_check
      _
    $region187: #{tpu_custom_call.1} parent=1 // pred_check_branch
      %256 = sbr.rel (0) target = $region189
    $region188: #{tpu_custom_call.1} parent=1 // pred_region
      %s258 = ssub.s32 2, 1
      loop: start=0, step=1, limit=1
      $region190: #{tpu_custom_call.1} parent=188 // loop_pre_header
        _
      $region191: #{tpu_custom_call.1} parent=188 // loop_header
        %s260 = sphi 0, %s264
        %p261 = scmp.ge.s32.totalorder %s260, 1
        %s265 = sphi %s250, %s250
        %s266 = sphi %s251, %s251
      $region192: #{tpu_custom_call.1} parent=188 // loop_header_branch
        %263 = sbr.rel (%p261) target = $region196
      $region193: #{tpu_custom_call.1} parent=188 // loop_body
        %v267 = vld [vmem:[%s265] sm:%s258]
        %268 = vst [vmem:[%s266] sm:%s258] %v267
      $region194: #{tpu_custom_call.1} parent=188 // loop_footer
        %s264 = sadd.s32 1, %s260
      $region195: #{tpu_custom_call.1} parent=188 // loop_footer_branch
        %259 = sbr.rel target = $region191
      $region196: #{tpu_custom_call.1} parent=188 // loop_exit
        _
    $region189: #{tpu_custom_call.1} parent=1 // pred_fallthru
      _
    // Predicated region
    $region208: #{tpu_custom_call.1} parent=1 // pred_check
      _
    $region209: #{tpu_custom_call.1} parent=1 // pred_check_branch
      %285 = sbr.rel (0) target = $region211
    $region210: #{tpu_custom_call.1} parent=1 // pred_region
      %286 = vsyncadd %s252, 16
    $region211: #{tpu_custom_call.1} parent=1 // pred_fallthru
      _
    %s287 = sadd.s32 %s16, 7
    %s288 = sld [smem:[#allocation5 + %s287]]
    %s289 = scalar_lea.vmem %s1, %s288
    %s290 = scalar_lea.vmem [#allocation2], 7
    %s291 = scalar_lea.sflag [#allocation3], 7
    // Predicated region
    $region212: #{tpu_custom_call.1} parent=1 // pred_check
      _
    $region213: #{tpu_custom_call.1} parent=1 // pred_check_branch
      %293 = sbr.rel target = $region215
    $region214: #{tpu_custom_call.1} parent=1 // pred_region
      // Predicated region
      $region227: #{tpu_custom_call.1} parent=214 // pred_check
        _
      $region228: #{tpu_custom_call.1} parent=214 // pred_check_branch
        %309 = sbr.rel (0) target = $region230
      $region229: #{tpu_custom_call.1} parent=214 // pred_region
        %s311 = ssub.s32 2, 1
        loop: start=0, step=1, limit=1
        $region231: #{tpu_custom_call.1} parent=229 // loop_pre_header
          _
        $region232: #{tpu_custom_call.1} parent=229 // loop_header
          %s313 = sphi 0, %s317
          %p314 = scmp.ge.s32.totalorder %s313, 1
          %s318 = sphi %s289, %s289
          %s319 = sphi %s290, %s290
        $region233: #{tpu_custom_call.1} parent=229 // loop_header_branch
          %316 = sbr.rel (%p314) target = $region237
        $region234: #{tpu_custom_call.1} parent=229 // loop_body
          %v320 = vld [vmem:[%s318] sm:%s311]
          %321 = vst [vmem:[%s319] sm:%s311] %v320
        $region235: #{tpu_custom_call.1} parent=229 // loop_footer
          %s317 = sadd.s32 1, %s313
        $region236: #{tpu_custom_call.1} parent=229 // loop_footer_branch
          %312 = sbr.rel target = $region232
        $region237: #{tpu_custom_call.1} parent=229 // loop_exit
          _
      $region230: #{tpu_custom_call.1} parent=214 // pred_fallthru
        _
    $region215: #{tpu_custom_call.1} parent=1 // pred_fallthru
      _
    // Predicated region
    $region216: #{tpu_custom_call.1} parent=1 // pred_check
      _
    $region217: #{tpu_custom_call.1} parent=1 // pred_check_branch
      %295 = sbr.rel (0) target = $region219
    $region218: #{tpu_custom_call.1} parent=1 // pred_region
      %s297 = ssub.s32 2, 1
      loop: start=0, step=1, limit=1
      $region220: #{tpu_custom_call.1} parent=218 // loop_pre_header
        _
      $region221: #{tpu_custom_call.1} parent=218 // loop_header
        %s299 = sphi 0, %s303
        %p300 = scmp.ge.s32.totalorder %s299, 1
        %s304 = sphi %s289, %s289
        %s305 = sphi %s290, %s290
      $region222: #{tpu_custom_call.1} parent=218 // loop_header_branch
        %302 = sbr.rel (%p300) target = $region226
      $region223: #{tpu_custom_call.1} parent=218 // loop_body
        %v306 = vld [vmem:[%s304] sm:%s297]
        %307 = vst [vmem:[%s305] sm:%s297] %v306
      $region224: #{tpu_custom_call.1} parent=218 // loop_footer
        %s303 = sadd.s32 1, %s299
      $region225: #{tpu_custom_call.1} parent=218 // loop_footer_branch
        %298 = sbr.rel target = $region221
      $region226: #{tpu_custom_call.1} parent=218 // loop_exit
        _
    $region219: #{tpu_custom_call.1} parent=1 // pred_fallthru
      _
    // Predicated region
    $region238: #{tpu_custom_call.1} parent=1 // pred_check
      _
    $region239: #{tpu_custom_call.1} parent=1 // pred_check_branch
      %324 = sbr.rel (0) target = $region241
    $region240: #{tpu_custom_call.1} parent=1 // pred_region
      %325 = vsyncadd %s291, 16
    $region241: #{tpu_custom_call.1} parent=1 // pred_fallthru
      _
    loop: start=0, step=1, limit=16
    $region242: #{tpu_custom_call.1} parent=1 // loop_pre_header
      _
    $region243: #{tpu_custom_call.1} parent=1 // loop_header
      %s327 = sphi 0, %s331
      %p328 = scmp.ge.s32.totalorder %s327, 16
    $region244: #{tpu_custom_call.1} parent=1 // loop_header_branch
      %330 = sbr.rel (%p328) target = $region248
    $region245: #{tpu_custom_call.1} parent=1 // loop_body
      %p332 = scmp.lt.s32.totalorder %s327, 0
      %s333 = ssub.s32 0, %s327
      %s334 = scalar_select %p332, %s333, %s327
      %s335 = sand.u32 %s334, 7
      %s336 = ssub.s32 0, %s335
      %s337 = scalar_select %p332, %s336, %s335
      %p338 = scmp.ne.s32.totalorder %s337, 0
      %p339 = scmp.lt.s32.totalorder %s337, 0
      %p340 = pnand %p339, %p338
      %p341 = pneg %p340
      %s342 = sadd.s32 %s337, 8
      %s343 = scalar_select %p341, %s342, %s337
      %s344 = scalar_lea.sflag [#allocation3], %s343
      %s345 = smul.u32 1, 1
      %s346 = sshll.u32 %s345, 4
      %347 = dma.done %s344, %s346
      %s348 = sadd.s32 %s327, 8
      %p349 = scmp.lt.s32.totalorder %s348, 16
      // Predicated region
      $region249: #{tpu_custom_call.1} parent=245 // pred_check
        %p350 = pneg %p349
      $region250: #{tpu_custom_call.1} parent=245 // pred_check_branch
        %352 = sbr.rel (%p350) target = $region252
      $region251: #{tpu_custom_call.1} parent=245 // pred_region
        %s353 = sadd.s32 %s16, %s348
        %s354 = sld [smem:[#allocation5 + %s353]]
        %p355 = scmp.lt.s32.totalorder %s348, 0
        %s356 = ssub.s32 0, %s348
        %s357 = scalar_select %p355, %s356, %s348
        %s358 = sand.u32 %s357, 7
        %s359 = ssub.s32 0, %s358
        %s360 = scalar_select %p355, %s359, %s358
        %p361 = scmp.ne.s32.totalorder %s360, 0
        %p362 = scmp.lt.s32.totalorder %s360, 0
        %p363 = pnand %p362, %p361
        %p364 = pneg %p363
        %s365 = sadd.s32 %s360, 8
        %s366 = scalar_select %p364, %s365, %s360
        %s367 = scalar_lea.vmem %s1, %s354
        %s368 = scalar_lea.vmem [#allocation2], %s348
        %s369 = scalar_lea.sflag [#allocation3], %s366
        // Predicated region
        $region253: #{tpu_custom_call.1} parent=251 // pred_check
          _
        $region254: #{tpu_custom_call.1} parent=251 // pred_check_branch
          %371 = sbr.rel target = $region256
        $region255: #{tpu_custom_call.1} parent=251 // pred_region
          // Predicated region
          $region268: #{tpu_custom_call.1} parent=255 // pred_check
            _
          $region269: #{tpu_custom_call.1} parent=255 // pred_check_branch
            %387 = sbr.rel (0) target = $region271
          $region270: #{tpu_custom_call.1} parent=255 // pred_region
            %s389 = ssub.s32 2, 1
            loop: start=0, step=1, limit=1
            $region272: #{tpu_custom_call.1} parent=270 // loop_pre_header
              _
            $region273: #{tpu_custom_call.1} parent=270 // loop_header
              %s391 = sphi 0, %s395
              %p392 = scmp.ge.s32.totalorder %s391, 1
              %s396 = sphi %s367, %s367
              %s397 = sphi %s368, %s368
            $region274: #{tpu_custom_call.1} parent=270 // loop_header_branch
              %394 = sbr.rel (%p392) target = $region278
            $region275: #{tpu_custom_call.1} parent=270 // loop_body
              %v398 = vld [vmem:[%s396] sm:%s389]
              %399 = vst [vmem:[%s397] sm:%s389] %v398
            $region276: #{tpu_custom_call.1} parent=270 // loop_footer
              %s395 = sadd.s32 1, %s391
            $region277: #{tpu_custom_call.1} parent=270 // loop_footer_branch
              %390 = sbr.rel target = $region273
            $region278: #{tpu_custom_call.1} parent=270 // loop_exit
              _
          $region271: #{tpu_custom_call.1} parent=255 // pred_fallthru
            _
        $region256: #{tpu_custom_call.1} parent=251 // pred_fallthru
          _
        // Predicated region
        $region257: #{tpu_custom_call.1} parent=251 // pred_check
          _
        $region258: #{tpu_custom_call.1} parent=251 // pred_check_branch
          %373 = sbr.rel (0) target = $region260
        $region259: #{tpu_custom_call.1} parent=251 // pred_region
          %s375 = ssub.s32 2, 1
          loop: start=0, step=1, limit=1
          $region261: #{tpu_custom_call.1} parent=259 // loop_pre_header
            _
          $region262: #{tpu_custom_call.1} parent=259 // loop_header
            %s377 = sphi 0, %s381
            %p378 = scmp.ge.s32.totalorder %s377, 1
            %s382 = sphi %s367, %s367
            %s383 = sphi %s368, %s368
          $region263: #{tpu_custom_call.1} parent=259 // loop_header_branch
            %380 = sbr.rel (%p378) target = $region267
          $region264: #{tpu_custom_call.1} parent=259 // loop_body
            %v384 = vld [vmem:[%s382] sm:%s375]
            %385 = vst [vmem:[%s383] sm:%s375] %v384
          $region265: #{tpu_custom_call.1} parent=259 // loop_footer
            %s381 = sadd.s32 1, %s377
          $region266: #{tpu_custom_call.1} parent=259 // loop_footer_branch
            %376 = sbr.rel target = $region262
          $region267: #{tpu_custom_call.1} parent=259 // loop_exit
            _
        $region260: #{tpu_custom_call.1} parent=251 // pred_fallthru
          _
        // Predicated region
        $region279: #{tpu_custom_call.1} parent=251 // pred_check
          _
        $region280: #{tpu_custom_call.1} parent=251 // pred_check_branch
          %402 = sbr.rel (0) target = $region282
        $region281: #{tpu_custom_call.1} parent=251 // pred_region
          %403 = vsyncadd %s369, 16
        $region282: #{tpu_custom_call.1} parent=251 // pred_fallthru
          _
      $region252: #{tpu_custom_call.1} parent=245 // pred_fallthru
        _
    $region246: #{tpu_custom_call.1} parent=1 // loop_footer
      %s331 = sadd.s32 1, %s327
    $region247: #{tpu_custom_call.1} parent=1 // loop_footer_branch
      %326 = sbr.rel target = $region243
    $region248: #{tpu_custom_call.1} parent=1 // loop_exit
      _
    %v404 = vld [vmem:[#allocation2] sm:$0xff]
    %v405 = vld [vmem:[#allocation2 + $0x8] sm:$0xff]
    %vm406 = vcmask 261120
    %407 = vst.msk [vmem:[#allocation6] sm:$0xff] %vm406, %v404
    %408 = vst.msk [vmem:[#allocation6 + $0x8] sm:$0xff] %vm406, %v405
    // Predicated region
    $region283: #{tpu_custom_call.1} parent=1 // pred_check
      _
    $region284: #{tpu_custom_call.1} parent=1 // pred_check_branch
      %410 = sbr.rel (0) target = $region286
    $region285: #{tpu_custom_call.1} parent=1 // pred_region
      %412 = vsyncadd [#allocation7], 0
      %s413 = sshll.u32 [#allocation6], 4
      %s414 = int_to_ptr.vmem [resolvable:$true] %s413
      %s415 = sshll.u32 %s2, 4
      %s416 = int_to_ptr.hbm [resolvable:$true] %s415
      %421 = dma.vmem_to_hbm [thread:$0]  %s414, 256, %s416, [#allocation7], 128, 128, 8
    $region286: #{tpu_custom_call.1} parent=1 // pred_fallthru
      _
    // Predicated region
    $region287: #{tpu_custom_call.1} parent=1 // pred_check
      _
    $region288: #{tpu_custom_call.1} parent=1 // pred_check_branch
      %423 = sbr.rel (0) target = $region290
    $region289: #{tpu_custom_call.1} parent=1 // pred_region
      %425 = dma.done [#allocation7], 256
    $region290: #{tpu_custom_call.1} parent=1 // pred_fallthru
      _
    %426 = vsyncpa [#allocation7], 1
  %427 = vsyncmov [#allocation3]
  %s428 = vpop.sfrf %427
  %p429 = scmp.eq.s32.totalorder %s428, 0
  %p430 = pneg %p429
  %432 = shalt.err (%p430)
  %s433 = scalar_lea.sflag [#allocation3], 1
  %434 = vsyncmov %s433
  %s435 = vpop.sfrf %434
  %p436 = scmp.eq.s32.totalorder %s435, 0
  %p437 = pneg %p436
  %439 = shalt.err (%p437)
  %s440 = scalar_lea.sflag [#allocation3], 2
  %441 = vsyncmov %s440
  %s442 = vpop.sfrf %441
  %p443 = scmp.eq.s32.totalorder %s442, 0
  %p444 = pneg %p443
  %446 = shalt.err (%p444)
  %s447 = scalar_lea.sflag [#allocation3], 3
  %448 = vsyncmov %s447
  %s449 = vpop.sfrf %448
  %p450 = scmp.eq.s32.totalorder %s449, 0
  %p451 = pneg %p450
  %453 = shalt.err (%p451)
  %s454 = scalar_lea.sflag [#allocation3], 4
  %455 = vsyncmov %s454
  %s456 = vpop.sfrf %455
  %p457 = scmp.eq.s32.totalorder %s456, 0
  %p458 = pneg %p457
  %460 = shalt.err (%p458)
  %s461 = scalar_lea.sflag [#allocation3], 5
  %462 = vsyncmov %s461
  %s463 = vpop.sfrf %462
  %p464 = scmp.eq.s32.totalorder %s463, 0
  %p465 = pneg %p464
  %467 = shalt.err (%p465)
  %s468 = scalar_lea.sflag [#allocation3], 6
  %469 = vsyncmov %s468
  %s470 = vpop.sfrf %469
  %p471 = scmp.eq.s32.totalorder %s470, 0
  %p472 = pneg %p471
  %474 = shalt.err (%p472)
  %s475 = scalar_lea.sflag [#allocation3], 7
  %476 = vsyncmov %s475
  %s477 = vpop.sfrf %476
  %p478 = scmp.eq.s32.totalorder %s477, 0
  %p479 = pneg %p478
  %481 = shalt.err (%p479)

</llo_original>
